<compile_context>
chip_gen: v7x
topology: tpu7x:2x2x1
jax: 0.10.0
libtpu: 0.0.40
codegen_flags: <defaults>
</compile_context>

<pallas_src>
import functools

import jax
import jax.numpy as jnp
from jax.experimental import pallas as pl
from jax.experimental.pallas import tpu as pltpu


def _round_up(n, m):
    return ((n + m - 1) // m) * m


def _mlp_kernel(x_ref, w1_ref, b1_ref, w2_ref, b2_ref, o_ref):
    """One batch tile of the classifier MLP.

    x_ref  : (TB, D)  activations (caller dtype; cast to bf16 for the MXU)
    w1_ref : (D, H)   bf16, grid-invariant (single-buffered)
    b1_ref : (1, H)   f32
    w2_ref : (1, H)   f32, second-layer weight as a row
    b2_ref : (1, 1)   f32 scalar in SMEM
    o_ref  : (TB, 1)  f32 probabilities
    """
    # Layer 1 on the MXU: bf16 operands, f32 accumulation.
    x_bf = x_ref[...].astype(jnp.bfloat16)
    h = jnp.dot(x_bf, w1_ref[...], preferred_element_type=jnp.float32)
    h = jnp.maximum(h + b1_ref[...], 0.0)  # bias + ReLU on the VPU

    # Dropout: identity at inference.
    # TODO(synk): training-mode dropout not implemented.

    # Layer 2 (H -> 1): VPU multiply + XLU lane reduce instead of an N=1 MXU matmul.
    z = jnp.sum(h * w2_ref[...], axis=-1, keepdims=True)  # (TB, 1)
    z = z + b2_ref[0, 0]                                   # scalar bias from SMEM

    # Numerically stable sigmoid on the EUP (tanh form: no inf intermediate).
    # NOTE: output stays a (TB, 1) column; a lane-dense layout would need a
    # per-tile sublane->lane transpose that costs more than the few output bytes
    # it would save at these sizes.
    o_ref[...] = 0.5 * (jnp.tanh(0.5 * z) + 1.0)


@functools.partial(jax.jit, static_argnames=("block_b",))
def bert_fc_classifier(x, w1, b1, w2, b2, *, block_b=None):
    """x: (B, D).  Returns (B, 1) f32 probabilities."""
    B, D = x.shape
    H = w1.shape[1]

    # Batch tile: big enough to fill the MXU / amortize per-step overhead.
    if block_b is None:
        block_b = min(256, _round_up(B, 8))
    padded_b = _round_up(B, block_b)
    if padded_b != B:
        x = jnp.pad(x, ((0, padded_b - B), (0, 0)))  # ragged batch -> zero-pad rows

    # bf16 weights for the MXU (halves W1's VMEM residency); biases stay f32.
    w1_bf = w1.astype(jnp.bfloat16)
    b1_r = b1.reshape(1, H).astype(jnp.float32)
    w2_r = w2.reshape(1, H).astype(jnp.float32)
    b2_r = jnp.asarray(b2, jnp.float32).reshape(1, 1)

    grid = (padded_b // block_b,)
    const = lambda i: (0, 0)  # grid-invariant operands

    out = pl.pallas_call(
        _mlp_kernel,
        out_shape=jax.ShapeDtypeStruct((padded_b, 1), jnp.float32),
        grid_spec=pltpu.PrefetchScalarGridSpec(
            num_scalar_prefetch=0,
            grid=grid,
            in_specs=[
                # x tile: the only operand that changes across the grid (pipelined).
                pl.BlockSpec((block_b, D), lambda i: (i, 0)),
                # Grid-invariant weights: single-buffered to save VMEM.
                pl.BlockSpec((D, H), const, pipeline_mode=pl.Buffered(1)),
                pl.BlockSpec((1, H), const, pipeline_mode=pl.Buffered(1)),
                pl.BlockSpec((1, H), const, pipeline_mode=pl.Buffered(1)),
                # b2: scalar in SMEM, no VMEM tile / DMA per step.
                pl.BlockSpec(memory_space=pltpu.MemorySpace.SMEM),
            ],
            out_specs=pl.BlockSpec((block_b, 1), lambda i: (i, 0)),
        ),
        compiler_params=pltpu.CompilerParams(
            # Batch tiles are independent -> shard across TensorCores (v7x megacore).
            dimension_semantics=("parallel",),
        ),
    )(x, w1_bf, b1_r, w2_r, b2_r)

    return out[:B]


def init_params(key, input_dim, hidden_dim):
    """Deterministic init mimicking nn.Linear's U(-1/sqrt(fan_in), 1/sqrt(fan_in))."""
    k1, k2, k3, k4 = jax.random.split(key, 4)
    bound1 = 1.0 / jnp.sqrt(jnp.float32(input_dim))
    bound2 = 1.0 / jnp.sqrt(jnp.float32(hidden_dim))
    w1 = jax.random.uniform(k1, (input_dim, hidden_dim), jnp.float32, -bound1, bound1)
    b1 = jax.random.uniform(k2, (hidden_dim,), jnp.float32, -bound1, bound1)
    w2 = jax.random.uniform(k3, (hidden_dim,), jnp.float32, -bound2, bound2)
    b2 = jax.random.uniform(k4, (), jnp.float32, -bound2, bound2)
    return w1, b1, w2, b2


if __name__ == "__main__":
    # Small shapes consistent with the module: batch=16, input_dim=256, hidden=128.
    B, D, H = 16, 256, 128

    key = jax.random.PRNGKey(0)
    kx, kp = jax.random.split(key)
    x = jax.random.normal(kx, (B, D), dtype=jnp.float32)
    w1, b1, w2, b2 = init_params(kp, D, H)

    out = bert_fc_classifier(x, w1, b1, w2, b2)
    out = jax.block_until_ready(out)

    # Reference in plain f32 JAX (eval-mode dropout = identity).  Tolerance is
    # loosened because the kernel runs the first matmul in bf16 on the MXU.
    ref = jax.nn.sigmoid(jnp.maximum(x @ w1 + b1, 0.0) @ w2 + b2)  # (B,)
    assert out.shape == (B, 1)
    assert jnp.allclose(out[:, 0], ref, atol=2e-2, rtol=2e-2), "mismatch vs reference"

    print("KERNEL_OK")
</pallas_src>

<mosaic_0001>
module attributes {stable_mosaic.version = 11 : i64} {
  func.func @_mlp_kernel(%arg0: i32, %arg1: memref<16x256xf32, #tpu.memory_space<vmem>>, %arg2: memref<256x128xbf16, #tpu.memory_space<vmem>>, %arg3: memref<1x128xf32, #tpu.memory_space<vmem>>, %arg4: memref<1x128xf32, #tpu.memory_space<vmem>>, %arg5: memref<1x1xf32, #tpu.memory_space<smem>>, %arg6: memref<16x1xf32, #tpu.memory_space<vmem>>) attributes {dimension_semantics = [#tpu.dimension_semantics<parallel>], iteration_bounds = array<i64: 1>, scalar_prefetch = 0 : i64, scratch_operands = 0 : i64, tpu.core_type = #tpu.core_type<tc>, window_params = [{transform_indices = @transform_0, window_bounds = array<i64: 16, 256>}, {pipeline_mode = #tpu.pipeline_mode<synchronous>, transform_indices = @transform_1, window_bounds = array<i64: 256, 128>}, {pipeline_mode = #tpu.pipeline_mode<synchronous>, transform_indices = @transform_2, window_bounds = array<i64: 1, 128>}, {pipeline_mode = #tpu.pipeline_mode<synchronous>, transform_indices = @transform_3, window_bounds = array<i64: 1, 128>}, {transform_indices = @transform_4, window_bounds = array<i64: 1, 1>}, {transform_indices = @transform_5, window_bounds = array<i64: 16, 1>}]} {
    %c0 = arith.constant 0 : index
    %c0_0 = arith.constant 0 : index
    %0 = vector.load %arg1[%c0, %c0_0] : memref<16x256xf32, #tpu.memory_space<vmem>>, vector<16x256xf32>
    %1 = arith.truncf %0 : vector<16x256xf32> to vector<16x256xbf16>
    %c0_1 = arith.constant 0 : index
    %c0_2 = arith.constant 0 : index
    %2 = vector.load %arg2[%c0_1, %c0_2] : memref<256x128xbf16, #tpu.memory_space<vmem>>, vector<256x128xbf16>
    %cst = arith.constant dense<0.000000e+00> : vector<16x128xf32>
    %3 = tpu.matmul %1, %2, %cst {dimension_numbers = #tpu.dot_dimension_numbers<[1], [0], [0], [1], [0, 0, 1, 1], [], []>} : vector<16x256xbf16>, vector<256x128xbf16>, vector<16x128xf32> -> vector<16x128xf32>
    %c0_3 = arith.constant 0 : index
    %c0_4 = arith.constant 0 : index
    %4 = vector.load %arg3[%c0_3, %c0_4] : memref<1x128xf32, #tpu.memory_space<vmem>>, vector<1x128xf32>
    %5 = vector.broadcast %4 : vector<1x128xf32> to vector<16x128xf32>
    %6 = arith.addf %3, %5 : vector<16x128xf32>
    %cst_5 = arith.constant 0.000000e+00 : f32
    %7 = vector.broadcast %cst_5 : f32 to vector<16x128xf32>
    %8 = arith.maximumf %6, %7 : vector<16x128xf32>
    %c0_6 = arith.constant 0 : index
    %c0_7 = arith.constant 0 : index
    %9 = vector.load %arg4[%c0_6, %c0_7] : memref<1x128xf32, #tpu.memory_space<vmem>>, vector<1x128xf32>
    %10 = vector.broadcast %9 : vector<1x128xf32> to vector<16x128xf32>
    %11 = arith.mulf %8, %10 : vector<16x128xf32>
    %cst_8 = arith.constant dense<0.000000e+00> : vector<16xf32>
    %12 = vector.multi_reduction <add>, %11, %cst_8 [1] : vector<16x128xf32> to vector<16xf32>
    %13 = vector.shape_cast %12 : vector<16xf32> to vector<16x1xf32>
    %c0_9 = arith.constant 0 : index
    %c0_10 = arith.constant 0 : index
    %14 = memref.load %arg5[%c0_9, %c0_10] : memref<1x1xf32, #tpu.memory_space<smem>>
    %15 = vector.broadcast %14 : f32 to vector<16x1xf32>
    %16 = arith.addf %13, %15 : vector<16x1xf32>
    %cst_11 = arith.constant 5.000000e-01 : f32
    %17 = vector.broadcast %cst_11 : f32 to vector<16x1xf32>
    %18 = arith.mulf %17, %16 : vector<16x1xf32>
    %19 = math.tanh %18 : vector<16x1xf32>
    %cst_12 = arith.constant 1.000000e+00 : f32
    %20 = vector.broadcast %cst_12 : f32 to vector<16x1xf32>
    %21 = arith.addf %19, %20 : vector<16x1xf32>
    %cst_13 = arith.constant 5.000000e-01 : f32
    %22 = vector.broadcast %cst_13 : f32 to vector<16x1xf32>
    %23 = arith.mulf %22, %21 : vector<16x1xf32>
    %c0_14 = arith.constant 0 : index
    %c0_15 = arith.constant 0 : index
    %24 = vector.load %arg6[%c0_14, %c0_15] : memref<16x1xf32, #tpu.memory_space<vmem>>, vector<16x1xf32>
    tpu.vector_store %arg6[%c0_14, %c0_15], %23 {strides = array<i32>} : memref<16x1xf32, #tpu.memory_space<vmem>>, vector<16x1xf32>,
    return
  }
  func.func @transform_0(%arg0: i32) -> (i32, i32) {
    %c0_i32 = arith.constant 0 : i32
    %c0_i32_0 = arith.constant 0 : i32
    return %arg0, %c0_i32 : i32, i32
  }
  func.func @transform_1(%arg0: i32) -> (i32, i32) {
    %c0_i32 = arith.constant 0 : i32
    %c0_i32_0 = arith.constant 0 : i32
    %c0_i32_1 = arith.constant 0 : i32
    return %c0_i32, %c0_i32_0 : i32, i32
  }
  func.func @transform_2(%arg0: i32) -> (i32, i32) {
    %c0_i32 = arith.constant 0 : i32
    %c0_i32_0 = arith.constant 0 : i32
    %c0_i32_1 = arith.constant 0 : i32
    return %c0_i32, %c0_i32_0 : i32, i32
  }
  func.func @transform_3(%arg0: i32) -> (i32, i32) {
    %c0_i32 = arith.constant 0 : i32
    %c0_i32_0 = arith.constant 0 : i32
    %c0_i32_1 = arith.constant 0 : i32
    return %c0_i32, %c0_i32_0 : i32, i32
  }
  func.func @transform_4(%arg0: i32) -> (i32, i32) {
    %c0_i32 = arith.constant 0 : i32
    %c0_i32_0 = arith.constant 0 : i32
    %c0_i32_1 = arith.constant 0 : i32
    return %c0_i32, %c0_i32_0 : i32, i32
  }
  func.func @transform_5(%arg0: i32) -> (i32, i32) {
    %c0_i32 = arith.constant 0 : i32
    %c0_i32_0 = arith.constant 0 : i32
    return %arg0, %c0_i32 : i32, i32
  }
}

</mosaic_0001>

<llo_original>
// kernel: bert_fc_classifier.1
$region0: #{bert_fc_classifier.1}
  #allocation0 [shape = 'u32[]', space=smem, size = 0x4, offset = 0x4, fixed_abs, tag = 'smem constant byte address 0x4 - core index']
  #allocation1 [shape = 'u32[144,128]{1,0:T(1,128)}', space=vmem, size = 0x12000, scoped, tag = 'internal scratch']
  #allocation2 [shape = 'f32[1,1]{1,0:T(1,128)S(6)}', space=smem, size = 0x200, scoped, tag = 'scoped memory for bert_fc_classifier.1']
  %s0 = inlined_call_operand.vmem [shape: f32[16,256], index: 0, kind: input, shape index: {}]
  %s1 = inlined_call_operand.vmem [shape: bf16[256,128], index: 1, kind: input, shape index: {}]
  %s2 = inlined_call_operand.vmem [shape: f32[1,128], index: 2, kind: input, shape index: {}]
  %s3 = inlined_call_operand.vmem [shape: f32[1,128], index: 3, kind: input, shape index: {}]
  %s4 = inlined_call_operand.<no memory space> [shape: f32[1,1], index: 4, kind: input, shape index: {}]
  %s5 = inlined_call_operand.vmem [shape: f32[16,1], index: 5, kind: output, shape index: {}]
  %s6 = sld [smem:[#allocation0]]
  $region30: #{bert_fc_classifier.1} parent=0
    _
  %s8 = ssub.s32 1, %s6
  %s9 = scalar_select 0, %s8, %s6
  %10 = sst [smem:[#allocation2]] %s4
  // Predicated region
  $region2: #{bert_fc_classifier.1} parent=0 // pred_check
    _
  $region3: #{bert_fc_classifier.1} parent=0 // pred_check_branch
    %12 = sbr.rel (0) target = $region5
  $region4: #{bert_fc_classifier.1} parent=0 // pred_region
    _
  $region5: #{bert_fc_classifier.1} parent=0 // pred_fallthru
    _
  // Predicated region
  $region6: #{bert_fc_classifier.1} parent=0 // pred_check
    _
  $region7: #{bert_fc_classifier.1} parent=0 // pred_check_branch
    %14 = sbr.rel (0) target = $region9
  $region8: #{bert_fc_classifier.1} parent=0 // pred_region
    _
  $region9: #{bert_fc_classifier.1} parent=0 // pred_fallthru
    _
  // Predicated region
  $region10: #{bert_fc_classifier.1} parent=0 // pred_check
    _
  $region11: #{bert_fc_classifier.1} parent=0 // pred_check_branch
    %16 = sbr.rel (0) target = $region13
  $region12: #{bert_fc_classifier.1} parent=0 // pred_region
    _
  $region13: #{bert_fc_classifier.1} parent=0 // pred_fallthru
    _
  // Predicated region
  $region14: #{bert_fc_classifier.1} parent=0 // pred_check
    _
  $region15: #{bert_fc_classifier.1} parent=0 // pred_check_branch
    %18 = sbr.rel (0) target = $region17
  $region16: #{bert_fc_classifier.1} parent=0 // pred_region
    _
  $region17: #{bert_fc_classifier.1} parent=0 // pred_fallthru
    _
  // Predicated region
  $region18: #{bert_fc_classifier.1} parent=0 // pred_check
    _
  $region19: #{bert_fc_classifier.1} parent=0 // pred_check_branch
    %20 = sbr.rel (0) target = $region21
  $region20: #{bert_fc_classifier.1} parent=0 // pred_region
    _
  $region21: #{bert_fc_classifier.1} parent=0 // pred_fallthru
    _
  %v22 = vld [vmem:[%s0] sm:$0xff]
  %v23 = vld [vmem:[%s0 + $0x8] sm:$0xff]
  %v24 = vld [vmem:[%s0 + $0x10] sm:$0xff]
  %v25 = vld [vmem:[%s0 + $0x18] sm:$0xff]
  %v26 = vpack.c.bf16 %v24, %v22
  %v27 = vpack.c.bf16 %v25, %v23
  %v28 = vld [vmem:[%s1] sm:$0xf]
  %v29 = vld [vmem:[%s1 + $0x4] sm:$0xf]
  %v30 = vld [vmem:[%s1 + $0x8] sm:$0xf]
  %v31 = vld [vmem:[%s1 + $0xc] sm:$0xf]
  %v32 = vld [vmem:[%s1 + $0x10] sm:$0xf]
  %v33 = vld [vmem:[%s1 + $0x14] sm:$0xf]
  %v34 = vld [vmem:[%s1 + $0x18] sm:$0xf]
  %v35 = vld [vmem:[%s1 + $0x1c] sm:$0xf]
  %v36 = vld [vmem:[%s1 + $0x20] sm:$0xf]
  %v37 = vld [vmem:[%s1 + $0x24] sm:$0xf]
  %v38 = vld [vmem:[%s1 + $0x28] sm:$0xf]
  %v39 = vld [vmem:[%s1 + $0x2c] sm:$0xf]
  %v40 = vld [vmem:[%s1 + $0x30] sm:$0xf]
  %v41 = vld [vmem:[%s1 + $0x34] sm:$0xf]
  %v42 = vld [vmem:[%s1 + $0x38] sm:$0xf]
  %v43 = vld [vmem:[%s1 + $0x3c] sm:$0xf]
  %v44 = vld [vmem:[%s1 + $0x40] sm:$0xf]
  %v45 = vld [vmem:[%s1 + $0x44] sm:$0xf]
  %v46 = vld [vmem:[%s1 + $0x48] sm:$0xf]
  %v47 = vld [vmem:[%s1 + $0x4c] sm:$0xf]
  %v48 = vld [vmem:[%s1 + $0x50] sm:$0xf]
  %v49 = vld [vmem:[%s1 + $0x54] sm:$0xf]
  %v50 = vld [vmem:[%s1 + $0x58] sm:$0xf]
  %v51 = vld [vmem:[%s1 + $0x5c] sm:$0xf]
  %v52 = vld [vmem:[%s1 + $0x60] sm:$0xf]
  %v53 = vld [vmem:[%s1 + $0x64] sm:$0xf]
  %v54 = vld [vmem:[%s1 + $0x68] sm:$0xf]
  %v55 = vld [vmem:[%s1 + $0x6c] sm:$0xf]
  %v56 = vld [vmem:[%s1 + $0x70] sm:$0xf]
  %v57 = vld [vmem:[%s1 + $0x74] sm:$0xf]
  %v58 = vld [vmem:[%s1 + $0x78] sm:$0xf]
  %v59 = vld [vmem:[%s1 + $0x7c] sm:$0xf]
  %v60 = vld [vmem:[%s2] sm:$0x1]
  %v62 = vlaneseq
  %v63 = vshrl.u32 %v62, 7
  %v64 = vsub.s32 0, %v63
  %v65 = vrot.slane %v60, %v64
  %v99 = vunpack.c.l.b16 %v28
  %v100 = vunpack.c.l.b16 %v29
  %v101 = vunpack.c.l.b16 %v30
  %v102 = vunpack.c.l.b16 %v31
  %v103 = vunpack.c.l.b16 %v32
  %v104 = vunpack.c.l.b16 %v33
  %v105 = vunpack.c.l.b16 %v34
  %v106 = vunpack.c.l.b16 %v35
  %v107 = vunpack.c.l.b16 %v36
  %v108 = vunpack.c.l.b16 %v37
  %v109 = vunpack.c.l.b16 %v38
  %v110 = vunpack.c.l.b16 %v39
  %v111 = vunpack.c.l.b16 %v40
  %v112 = vunpack.c.l.b16 %v41
  %v113 = vunpack.c.l.b16 %v42
  %v114 = vunpack.c.l.b16 %v43
  %v115 = vunpack.c.l.b16 %v44
  %v116 = vunpack.c.l.b16 %v45
  %v117 = vunpack.c.l.b16 %v46
  %v118 = vunpack.c.l.b16 %v47
  %v119 = vunpack.c.l.b16 %v48
  %v120 = vunpack.c.l.b16 %v49
  %v121 = vunpack.c.l.b16 %v50
  %v122 = vunpack.c.l.b16 %v51
  %v123 = vunpack.c.l.b16 %v52
  %v124 = vunpack.c.l.b16 %v53
  %v125 = vunpack.c.l.b16 %v54
  %v126 = vunpack.c.l.b16 %v55
  %v127 = vunpack.c.l.b16 %v56
  %v128 = vunpack.c.l.b16 %v57
  %v129 = vunpack.c.l.b16 %v58
  %v130 = vunpack.c.l.b16 %v59
  %v131 = vpack.c.b16 %v100, %v99
  %v132 = vpack.c.b16 %v102, %v101
  %v133 = vpack.c.b16 %v104, %v103
  %v134 = vpack.c.b16 %v106, %v105
  %v135 = vpack.c.b16 %v108, %v107
  %v136 = vpack.c.b16 %v110, %v109
  %v137 = vpack.c.b16 %v112, %v111
  %v138 = vpack.c.b16 %v114, %v113
  %v139 = vpack.c.b16 %v116, %v115
  %v140 = vpack.c.b16 %v118, %v117
  %v141 = vpack.c.b16 %v120, %v119
  %v142 = vpack.c.b16 %v122, %v121
  %v143 = vpack.c.b16 %v124, %v123
  %v144 = vpack.c.b16 %v126, %v125
  %v145 = vpack.c.b16 %v128, %v127
  %v146 = vpack.c.b16 %v130, %v129
  %163 = vmatprep.subr.bf16.mxu0 0
  %164 = vmatpush1.bf16.msra.mxu0 %v131
  %165 = vmatprep.subr.bf16.mxu0 0
  %166 = vmatpush1.bf16.msra.mxu0 %v132
  %167 = vmatprep.subr.bf16.mxu0 0
  %168 = vmatpush1.bf16.msra.mxu0 %v133
  %169 = vmatprep.subr.bf16.mxu0 0
  %170 = vmatpush1.bf16.msra.mxu0 %v134
  %171 = vmatprep.subr.bf16.mxu0 0
  %172 = vmatpush1.bf16.msra.mxu0 %v135
  %173 = vmatprep.subr.bf16.mxu0 0
  %174 = vmatpush1.bf16.msra.mxu0 %v136
  %175 = vmatprep.subr.bf16.mxu0 0
  %176 = vmatpush1.bf16.msra.mxu0 %v137
  %177 = vmatprep.subr.bf16.mxu0 0
  %178 = vmatpush1.bf16.msra.mxu0 %v138
  %179 = vmatprep.subr.bf16.mxu0 0
  %180 = vmatpush1.bf16.msra.mxu0 %v139
  %181 = vmatprep.subr.bf16.mxu0 0
  %182 = vmatpush1.bf16.msra.mxu0 %v140
  %183 = vmatprep.subr.bf16.mxu0 0
  %184 = vmatpush1.bf16.msra.mxu0 %v141
  %185 = vmatprep.subr.bf16.mxu0 0
  %186 = vmatpush1.bf16.msra.mxu0 %v142
  %187 = vmatprep.subr.bf16.mxu0 0
  %188 = vmatpush1.bf16.msra.mxu0 %v143
  %189 = vmatprep.subr.bf16.mxu0 0
  %190 = vmatpush1.bf16.msra.mxu0 %v144
  %191 = vmatprep.subr.bf16.mxu0 0
  %192 = vmatpush1.bf16.msra.mxu0 %v145
  %193 = vmatprep.subr.bf16.mxu0 0
  %194 = vmatpush1.bf16.msra.mxu0 %v146
  %195 = vmatprep.mubr.bf16.mxu0 %v27
  %196 = vmatmul.mubr.bf16.gmra.mrb[0].mxu0 %v26
  %v197 = vpop.f32.mrb[0].mxu0
  %v198 = vadd.f32 %v65, %v197
  %v199 = vpop.f32.mrb[0].mxu0
  %v200 = vpop.f32.mrb[0].mxu0
  %v201 = vadd.f32 %v65, %v200
  %v202 = vpop.f32.mrb[0].mxu0
  %203 = vdwg.mxu0
  %v204 = vmax.f32 %v198, 0.0
  %v205 = vmax.f32 %v201, 0.0
  %v206 = vld [vmem:[%s3] sm:$0x1]
  %v208 = vlaneseq
  %v209 = vshrl.u32 %v208, 7
  %v210 = vsub.s32 0, %v209
  %v211 = vrot.slane %v206, %v210
  %v213 = vmul.f32 %v204, %v211
  %v214 = vmul.f32 %v205, %v211
  %215 = vadd.xlane.f32.xlu0 %v213
  %v216 = vpop.xlane.xlu0 %215
  %217 = vadd.xlane.f32.xlu0 %v214
  %v218 = vpop.xlane.xlu0 %217
  %s219 = sld [smem:[#allocation2]]
  %v220 = vstv %s219
  %v221 = vadd.f32 %v216, %v220
  %v222 = vadd.f32 %v218, %v220
  %v223 = vmul.f32 %v221, 0.5
  %v224 = vmul.f32 %v222, 0.5
  %v225 = vtanh.pop %v223
  %v226 = vtanh.pop %v224
  %v227 = vadd.f32 %v225, 1.0
  %v228 = vadd.f32 %v226, 1.0
  %v229 = vmul.f32 %v227, 0.5
  %v230 = vmul.f32 %v228, 0.5
  %vm231 = vcmask 7168
  %232 = vst.msk [vmem:[%s5] sm:$0xff] %vm231, %v229
  %233 = vst.msk [vmem:[%s5 + $0x8] sm:$0xff] %vm231, %v230
  // Predicated region
  $region22: #{bert_fc_classifier.1} parent=0 // pred_check
    _
  $region23: #{bert_fc_classifier.1} parent=0 // pred_check_branch
    %235 = sbr.rel (0) target = $region25
  $region24: #{bert_fc_classifier.1} parent=0 // pred_region
    _
  $region25: #{bert_fc_classifier.1} parent=0 // pred_fallthru
    _
  // Predicated region
  $region26: #{bert_fc_classifier.1} parent=0 // pred_check
    _
  $region27: #{bert_fc_classifier.1} parent=0 // pred_check_branch
    %237 = sbr.rel (0) target = $region29
  $region28: #{bert_fc_classifier.1} parent=0 // pred_region
    _
  $region29: #{bert_fc_classifier.1} parent=0 // pred_fallthru
    _

</llo_original>
